<compile_context>
chip_gen: v7x
topology: tpu7x:2x2x1
jax: 0.10.0
libtpu: 0.0.40
codegen_flags: <defaults>
</compile_context>

<pallas_src>
import jax
import jax.numpy as jnp
from jax.experimental import pallas as pl
from jax.experimental.pallas import tpu as pltpu


# --------------------------------------------------------------------------
# Helpers
# --------------------------------------------------------------------------
def _round_up(x, m):
    return ((x + m - 1) // m) * m


def _choose_tile(dim, cap, granule):
    """Pick (tile, padded_dim): tile % granule == 0, padded_dim % tile == 0.

    Prefers the largest tile <= cap whose zero-padding waste is <= dim/8,
    so unaligned large dims never fall back to a single VMEM-busting block.
    """
    cap = max(granule, (cap // granule) * granule)
    if dim <= cap:
        t = _round_up(max(dim, 1), granule)
        return t, t
    t = cap
    while t > granule:
        padded = _round_up(dim, t)
        if (padded - dim) * 8 <= dim:
            return t, padded
        t -= granule
    return granule, _round_up(dim, granule)


def _vmem_budget_bytes():
    """Usable VMEM budget (with headroom) for tile selection / vmem_limit."""
    cap = None
    try:
        cap = int(pltpu.get_tpu_info().vmem_capacity_bytes)
    except Exception:
        cap = None
    if not cap or cap <= 0:
        cap = 64 << 20  # v7x-sized conservative fallback
    # Leave headroom for compiler temporaries / semaphores / internal scratch.
    return min(int(cap * 0.6), 96 << 20)


# --------------------------------------------------------------------------
# Fused linear head + temperature scaling:  out = (x @ w + b) / T
# --------------------------------------------------------------------------
def _fused_head_kernel(temp_ref, x_ref, w_ref, b_ref, o_ref):
    # temp_ref: SMEM (1,) f32   -- learned temperature
    # x_ref:    VMEM [TM, TK]   (f32 or bf16)
    # w_ref:    VMEM [TK, TN]   (f32 or bf16)
    # b_ref:    VMEM [1,  TN]   f32
    # o_ref:    VMEM [TM, TN]   f32 -- k-invariant block: used as accumulator
    k = pl.program_id(2)

    @pl.when(k == 0)
    def _init():
        o_ref[...] = jnp.zeros_like(o_ref)

    o_ref[...] += jnp.dot(
        x_ref[...], w_ref[...], preferred_element_type=jnp.float32
    )

    @pl.when(k == pl.num_programs(2) - 1)
    def _finalize():
        # One exact scalar divide; per-element work is a single vmul.
        inv_t = 1.0 / temp_ref[0]
        o_ref[...] = (o_ref[...] + b_ref[...]) * inv_t


def model_with_temperature_forward(
    x, w, b, temperature, *, matmul_dtype=None,
    tile_m=None, tile_n=None, tile_k=None,
):
    """Fused (linear-model logits -> temperature scaling) forward pass.

    x:           [B, H] float32
    w:           [H, C] float32
    b:           [C]    float32
    temperature: [1]    float32  (nn.Parameter torch.ones(1) * 1.5 equivalent)
    matmul_dtype: optional (e.g. jnp.bfloat16) MXU input dtype; accumulation,
                  bias-add and 1/T scaling always stay in f32.
    returns:     [B, C] float32  == (x @ w + b) / temperature
    """
    B, H = x.shape
    H2, C = w.shape
    assert H == H2, "x / w inner dimensions must match"

    in_dtype = jnp.dtype(matmul_dtype) if matmul_dtype is not None else jnp.dtype(x.dtype)
    in_bytes = in_dtype.itemsize
    budget = _vmem_budget_bytes()

    def footprint(tm, tn, tk):
        return (2 * (tm * tk + tk * tn) * in_bytes   # x / w double-buffered
                + 2 * tn * 4                          # bias
                + 2 * tm * tn * 4)                    # f32 output block

    # Candidate tile caps, largest first; first whose footprint fits VMEM wins.
    caps = [(tile_m or 1024, tile_n or 1024, tile_k or 1024),
            (512, 1024, 1024), (512, 512, 1024), (256, 512, 512),
            (256, 256, 512), (128, 256, 256), (128, 128, 256), (8, 128, 128)]
    tm = tn = tk = Bp = Cp = Hp = None
    for cm, cn, ck in caps:
        tm, Bp = _choose_tile(B, cm, 8)
        tn, Cp = _choose_tile(C, cn, 128)
        tk, Hp = _choose_tile(H, ck, 128)
        if footprint(tm, tn, tk) <= budget:
            break

    # v7x megacore: expose >= 2 blocks on the parallel axes when the whole
    # problem fits a single tile (near-free on 1-TC v5e/v6e).
    if Bp // tm == 1 and Cp // tn == 1:
        if tn >= 256 and tn % 256 == 0:
            tn //= 2
        elif tm >= 16 and tm % 16 == 0:
            tm //= 2

    grid = (Bp // tm, Cp // tn, Hp // tk)
    gi, gj, gk = grid

    # Wrapper-side zero padding -> lane/sublane-dense tiles, evenly dividing.
    xw = x.astype(in_dtype)
    ww = w.astype(in_dtype)
    if (Bp, Hp) != (B, H):
        xw = jnp.pad(xw, ((0, Bp - B), (0, Hp - H)))
    if (Hp, Cp) != (H, C):
        ww = jnp.pad(ww, ((0, Hp - H), (0, Cp - C)))
    b2d = b.astype(jnp.float32).reshape(1, C)
    if Cp != C:
        b2d = jnp.pad(b2d, ((0, 0), (0, Cp - C)))

    # Truthful traffic estimate: X re-read per column block, W per row block.
    cost = pl.CostEstimate(
        flops=2 * Bp * Hp * Cp,
        transcendentals=0,
        bytes_accessed=(gj * Bp * Hp * in_bytes
                        + gi * Hp * Cp * in_bytes
                        + Bp * Cp * 4
                        + gi * Cp * 4),
    )

    out = pl.pallas_call(
        _fused_head_kernel,
        out_shape=jax.ShapeDtypeStruct((Bp, Cp), jnp.float32),
        grid_spec=pltpu.PrefetchScalarGridSpec(
            num_scalar_prefetch=0,
            grid=grid,
            in_specs=[
                # temperature scalar lives in SMEM for the whole kernel
                pl.BlockSpec(memory_space=pltpu.SMEM),
                pl.BlockSpec((tm, tk), lambda i, j, k: (i, k)),   # activations
                pl.BlockSpec((tk, tn), lambda i, j, k: (k, j)),   # weight
                pl.BlockSpec((1, tn), lambda i, j, k: (0, j)),    # bias
            ],
            out_specs=pl.BlockSpec((tm, tn), lambda i, j, k: (i, j)),
        ),
        compiler_params=pltpu.CompilerParams(
            dimension_semantics=("parallel", "parallel", "arbitrary"),
            vmem_limit_bytes=int(budget),
        ),
        cost_estimate=cost,
    )(temperature.astype(jnp.float32), xw, ww, b2d)

    if (Bp, Cp) != (B, C):
        out = out[:B, :C]
    return out


# --------------------------------------------------------------------------
# Standalone ModelWithTemperature.temperature_scale:  logits / T
# --------------------------------------------------------------------------
def _scale_kernel(temp_ref, l_ref, o_ref):
    inv_t = 1.0 / temp_ref[0]
    o_ref[...] = (l_ref[...] * inv_t).astype(o_ref.dtype)


def temperature_scale(logits, temperature):
    """logits: [B, C], temperature: [1] f32 -> logits / temperature.

    Row-tiled so it pipelines within the per-generation VMEM budget.  Tiny or
    non-128-aligned class counts are flattened to a lane-dense 512-wide slab
    (exact: the op is elementwise) so stores are unmasked vst.
    """
    B, C = logits.shape
    dtype = logits.dtype
    isz = jnp.dtype(dtype).itemsize
    budget = _vmem_budget_bytes()

    total = B * C
    if C >= 128 and C % 128 == 0:
        work = logits
        rows, width = B, C
        flattened = False
    else:
        width = 512
        rows = pl.cdiv(total, width)
        flat = logits.reshape(-1)
        if rows * width != total:
            flat = jnp.pad(flat, (0, rows * width - total))
        work = flat.reshape(rows, width)
        flattened = True

    # Largest row-block (multiple of 8) whose 2 in + 2 out buffers fit budget.
    per_row = 4 * width * isz
    tb = max(8, min((budget // per_row) // 8 * 8, 2048, _round_up(rows, 8)))
    rows_pad = _round_up(rows, tb)
    if rows_pad != rows:
        work = jnp.pad(work, ((0, rows_pad - rows), (0, 0)))

    grid = (rows_pad // tb,)
    cost = pl.CostEstimate(
        flops=rows_pad * width,
        transcendentals=0,
        bytes_accessed=2 * rows_pad * width * isz,
    )

    out = pl.pallas_call(
        _scale_kernel,
        out_shape=jax.ShapeDtypeStruct((rows_pad, width), dtype),
        grid_spec=pltpu.PrefetchScalarGridSpec(
            num_scalar_prefetch=0,
            grid=grid,
            in_specs=[
                pl.BlockSpec(memory_space=pltpu.SMEM),
                pl.BlockSpec((tb, width), lambda i: (i, 0)),
            ],
            out_specs=pl.BlockSpec((tb, width), lambda i: (i, 0)),
        ),
        compiler_params=pltpu.CompilerParams(
            dimension_semantics=("parallel",),
            vmem_limit_bytes=int(budget),
        ),
        cost_estimate=cost,
    )(temperature.astype(jnp.float32), work)

    if flattened:
        return out.reshape(-1)[:total].reshape(B, C)
    if rows_pad != B:
        return out[:B]
    return out


if __name__ == "__main__":
    key = jax.random.PRNGKey(0)
    kx, kw, kb, kx2, kw2, kb2 = jax.random.split(key, 6)

    # nn.Parameter(torch.ones(1) * 1.5)
    temperature = jnp.ones((1,), dtype=jnp.float32) * 1.5

    # 1. Fused head + temperature scaling; tiles forced small so the 3-D grid,
    #    revisited-output accumulation and last-K epilogue are exercised
    #    (grid = (1, 4, 2)).
    B, H, C = 8, 256, 512
    x = jax.random.normal(kx, (B, H), dtype=jnp.float32)
    w = jax.random.normal(kw, (H, C), dtype=jnp.float32) * 0.1
    b = jax.random.normal(kb, (C,), dtype=jnp.float32) * 0.1

    out = jax.block_until_ready(
        model_with_temperature_forward(
            x, w, b, temperature, tile_m=8, tile_n=128, tile_k=128))
    ref = (x @ w + b) / temperature[0]
    assert out.shape == (B, C)
    assert jnp.allclose(out, ref, atol=1e-4, rtol=1e-5)

    # 2. Unaligned shapes -> wrapper-side zero padding (lane-dense tiles) and
    #    the >=2-parallel-block split for v7x megacore.
    B2, H2, C2 = 5, 96, 130
    x2 = jax.random.normal(kx2, (B2, H2), dtype=jnp.float32)
    w2 = jax.random.normal(kw2, (H2, C2), dtype=jnp.float32) * 0.1
    b2 = jax.random.normal(kb2, (C2,), dtype=jnp.float32) * 0.1
    out2 = jax.block_until_ready(
        model_with_temperature_forward(x2, w2, b2, temperature))
    ref2 = (x2 @ w2 + b2) / temperature[0]
    assert out2.shape == (B2, C2)
    assert jnp.allclose(out2, ref2, atol=1e-4, rtol=1e-5)

    # 3. Opt-in bf16-fed MXU (f32 accumulate + f32 epilogue).
    out_bf16 = jax.block_until_ready(
        model_with_temperature_forward(
            x, w, b, temperature, matmul_dtype=jnp.bfloat16))
    assert jnp.allclose(out_bf16, ref, atol=2e-1, rtol=5e-2)

    # 4. Standalone temperature_scale: 128-aligned (2-D path) and tiny-C
    #    (lane-dense flattened path) logits.
    logits = x @ w + b
    s1 = jax.block_until_ready(temperature_scale(logits, temperature))
    assert jnp.allclose(s1, logits / 1.5, atol=1e-5, rtol=1e-6)

    small = jax.random.normal(key, (33, 10), dtype=jnp.float32)
    s2 = jax.block_until_ready(temperature_scale(small, temperature))
    assert s2.shape == (33, 10)
    assert jnp.allclose(s2, small / 1.5, atol=1e-5, rtol=1e-6)

    # TODO(synk): set_temperature (LBFGS NLL/ECE calibration over a validation
    # DataLoader) is host-side training logic, not part of forward; omitted.
    print("KERNEL_OK")
</pallas_src>

<mosaic_0001>
module attributes {stable_mosaic.version = 11 : i64} {
  func.func @_fused_head_kernel(%arg0: i32, %arg1: i32, %arg2: i32, %arg3: memref<1xf32, #tpu.memory_space<smem>>, %arg4: memref<8x128xf32, #tpu.memory_space<vmem>>, %arg5: memref<128x128xf32, #tpu.memory_space<vmem>>, %arg6: memref<1x128xf32, #tpu.memory_space<vmem>>, %arg7: memref<8x128xf32, #tpu.memory_space<vmem>>) attributes {dimension_semantics = [#tpu.dimension_semantics<parallel>, #tpu.dimension_semantics<parallel>, #tpu.dimension_semantics<arbitrary>], iteration_bounds = array<i64: 1, 4, 2>, scalar_prefetch = 0 : i64, scratch_operands = 0 : i64, tpu.core_type = #tpu.core_type<tc>, window_params = [{transform_indices = @transform_0, window_bounds = array<i64: 1>}, {transform_indices = @transform_1, window_bounds = array<i64: 8, 128>}, {transform_indices = @transform_2, window_bounds = array<i64: 128, 128>}, {transform_indices = @transform_3, window_bounds = array<i64: 1, 128>}, {transform_indices = @transform_4, window_bounds = array<i64: 8, 128>}]} {
    %c0_i32 = arith.constant 0 : i32
    %0 = arith.cmpi eq, %arg2, %c0_i32 : i32
    %1 = arith.extui %0 : i1 to i32
    %c0_i32_0 = arith.constant 0 : i32
    %2 = arith.cmpi ne, %1, %c0_i32_0 : i32
    scf.if %2 {
      %cst_9 = arith.constant 0.000000e+00 : f32
      %12 = vector.broadcast %cst_9 : f32 to vector<8x128xf32>
      %c0_10 = arith.constant 0 : index
      %c0_11 = arith.constant 0 : index
      %13 = vector.load %arg7[%c0_10, %c0_11] : memref<8x128xf32, #tpu.memory_space<vmem>>, vector<8x128xf32>
      tpu.vector_store %arg7[%c0_10, %c0_11], %12 {strides = array<i32>} : memref<8x128xf32, #tpu.memory_space<vmem>>, vector<8x128xf32>,
    } else {
    }
    %c0 = arith.constant 0 : index
    %c0_1 = arith.constant 0 : index
    %3 = vector.load %arg7[%c0, %c0_1] : memref<8x128xf32, #tpu.memory_space<vmem>>, vector<8x128xf32>
    %c0_2 = arith.constant 0 : index
    %c0_3 = arith.constant 0 : index
    %4 = vector.load %arg4[%c0_2, %c0_3] : memref<8x128xf32, #tpu.memory_space<vmem>>, vector<8x128xf32>
    %c0_4 = arith.constant 0 : index
    %c0_5 = arith.constant 0 : index
    %5 = vector.load %arg5[%c0_4, %c0_5] : memref<128x128xf32, #tpu.memory_space<vmem>>, vector<128x128xf32>
    %cst = arith.constant dense<0.000000e+00> : vector<8x128xf32>
    %6 = tpu.matmul %4, %5, %cst {dimension_numbers = #tpu.dot_dimension_numbers<[1], [0], [0], [1], [0, 0, 1, 1], [], []>} : vector<8x128xf32>, vector<128x128xf32>, vector<8x128xf32> -> vector<8x128xf32>
    %7 = arith.addf %3, %6 : vector<8x128xf32>
    %c0_6 = arith.constant 0 : index
    %c0_7 = arith.constant 0 : index
    %8 = vector.load %arg7[%c0_6, %c0_7] : memref<8x128xf32, #tpu.memory_space<vmem>>, vector<8x128xf32>
    tpu.vector_store %arg7[%c0_6, %c0_7], %7 {strides = array<i32>} : memref<8x128xf32, #tpu.memory_space<vmem>>, vector<8x128xf32>,
    %c1_i32 = arith.constant 1 : i32
    %9 = arith.cmpi eq, %arg2, %c1_i32 : i32
    %10 = arith.extui %9 : i1 to i32
    %c0_i32_8 = arith.constant 0 : i32
    %11 = arith.cmpi ne, %10, %c0_i32_8 : i32
    scf.if %11 {
      %c0_9 = arith.constant 0 : index
      %12 = memref.load %arg3[%c0_9] : memref<1xf32, #tpu.memory_space<smem>>
      %cst_10 = arith.constant 1.000000e+00 : f32
      %13 = arith.divf %cst_10, %12 : f32
      %c0_11 = arith.constant 0 : index
      %c0_12 = arith.constant 0 : index
      %14 = vector.load %arg7[%c0_11, %c0_12] : memref<8x128xf32, #tpu.memory_space<vmem>>, vector<8x128xf32>
      %c0_13 = arith.constant 0 : index
      %c0_14 = arith.constant 0 : index
      %15 = vector.load %arg6[%c0_13, %c0_14] : memref<1x128xf32, #tpu.memory_space<vmem>>, vector<1x128xf32>
      %16 = vector.broadcast %15 : vector<1x128xf32> to vector<8x128xf32>
      %17 = arith.addf %14, %16 : vector<8x128xf32>
      %18 = vector.broadcast %13 : f32 to vector<8x128xf32>
      %19 = arith.mulf %17, %18 : vector<8x128xf32>
      %c0_15 = arith.constant 0 : index
      %c0_16 = arith.constant 0 : index
      %20 = vector.load %arg7[%c0_15, %c0_16] : memref<8x128xf32, #tpu.memory_space<vmem>>, vector<8x128xf32>
      tpu.vector_store %arg7[%c0_15, %c0_16], %19 {strides = array<i32>} : memref<8x128xf32, #tpu.memory_space<vmem>>, vector<8x128xf32>,
    } else {
    }
    return
  }
  func.func @transform_0(%arg0: i32, %arg1: i32, %arg2: i32) -> i32 {
    %c0_i32 = arith.constant 0 : i32
    %c0_i32_0 = arith.constant 0 : i32
    return %c0_i32 : i32
  }
  func.func @transform_1(%arg0: i32, %arg1: i32, %arg2: i32) -> (i32, i32) {
    %c0_i32 = arith.constant 0 : i32
    return %arg0, %arg2 : i32, i32
  }
  func.func @transform_2(%arg0: i32, %arg1: i32, %arg2: i32) -> (i32, i32) {
    %c0_i32 = arith.constant 0 : i32
    return %arg2, %arg1 : i32, i32
  }
  func.func @transform_3(%arg0: i32, %arg1: i32, %arg2: i32) -> (i32, i32) {
    %c0_i32 = arith.constant 0 : i32
    %c0_i32_0 = arith.constant 0 : i32
    return %c0_i32, %arg1 : i32, i32
  }
  func.func @transform_4(%arg0: i32, %arg1: i32, %arg2: i32) -> (i32, i32) {
    %c0_i32 = arith.constant 0 : i32
    return %arg0, %arg1 : i32, i32
  }
}

</mosaic_0001>

<llo_original>
// kernel: tpu_custom_call.1
$region0: #{tpu_custom_call.1}
  #allocation0 [shape = 'u32[]', space=smem, size = 0x4, offset = 0x4, fixed_abs, tag = 'smem constant byte address 0x4 - core index']
  #allocation1 [shape = 'u32[144,128]{1,0:T(1,128)}', space=vmem, size = 0x12000, scoped, tag = 'internal scratch']
  #allocation2 [shape = 'f32[1]{0:T(128)S(6)}', space=smem, size = 0x200, scoped, tag = 'scoped memory for tpu_custom_call.1']
  %s0 = inlined_call_operand.<no memory space> [shape: f32[1], index: 0, kind: input, shape index: {}]
  %s1 = inlined_call_operand.hbm [shape: f32[8,256], index: 1, kind: input, shape index: {}]
  %s2 = inlined_call_operand.hbm [shape: f32[256,512], index: 2, kind: input, shape index: {}]
  %s3 = inlined_call_operand.vmem [shape: f32[1,512], index: 3, kind: input, shape index: {}]
  %s4 = inlined_call_operand.hbm [shape: f32[8,512], index: 4, kind: output, shape index: {}]
  %s5 = sld [smem:[#allocation0]]
  $region65: #{tpu_custom_call.1} parent=0
    _
  %s7 = ssub.s32 1, %s5
  %s8 = scalar_select 0, %s7, %s5
  %9 = sst [smem:[#allocation2]] %s0
  $region1: #{tpu_custom_call.1} parent=0
    #allocation3 [shape = 'u8[8192]{0}', space=vmem, size = 0x2000, scoped, tag = 'input window, operand 1']
    #allocation4 [shape = 's32[2]{0}', space=sflag, size = 0x8, scoped, tag = 'scoped memory for tpu_custom_call.1']
    #allocation5 [shape = 's32[2]{0}', space=sflag, size = 0x8, scoped, tag = 'scoped memory for tpu_custom_call.1']
    #allocation6 [shape = 'u8[131072]{0}', space=vmem, size = 0x20000, scoped, tag = 'input window, operand 2']
    #allocation7 [shape = 's32[2]{0}', space=sflag, size = 0x8, scoped, tag = 'scoped memory for tpu_custom_call.1']
    #allocation8 [shape = 'u8[8192]{0}', space=vmem, size = 0x2000, scoped, tag = 'output window, operand 0']
    %10 = vsyncpa [#allocation4], 0
    %s11 = scalar_lea.sflag [#allocation4], 1
    %12 = vsyncpa %s11, 0
    %13 = vsyncpa [#allocation7], 0
    %s14 = scalar_lea.sflag [#allocation7], 1
    %15 = vsyncpa %s14, 0
    %16 = vsyncpa [#allocation5], 0
    %s17 = scalar_lea.sflag [#allocation5], 1
    %18 = vsyncpa %s17, 0
    loop: start=0, step=1, limit=10
    $region2: #{tpu_custom_call.1} parent=1 // loop_pre_header
      _
    $region3: #{tpu_custom_call.1} parent=1 // loop_header
      %s20 = sphi 0, %s24
      %p21 = scmp.ge.s32.totalorder %s20, 10
      %s27 = sphi 0, %s46
      %s28 = sphi 0, %s42
      %s29 = sphi 0, %s38
      %s30 = sphi 0, %s27
      %s31 = sphi 0, %s28
      %s32 = sphi 0, %s29
      %s33 = sphi 0, %s30
      %s34 = sphi 0, %s31
      %s35 = sphi 0, %s32
      %s47 = sphi 0, %s47
      %s49 = sphi 0, %s47
      %s50 = sphi 0, %s49
      %s64 = sphi 0, %s50
      %s72 = sphi 0, %s74
      %s75 = sphi 0, %s72
      %s76 = sphi 0, %s75
      %s92 = sphi 0, %s76
      %s100 = sphi 0, %s102
      %s103 = sphi 0, %s100
      %s104 = sphi 0, %s103
      %s120 = sphi 0, %s104
      %s126 = sphi 0, %s128
      %s129 = sphi 0, %s126
      %s130 = sphi 0, %s129
      %s146 = sphi 0, %s130
      %s154 = sphi 0, %s156
      %s157 = sphi 0, %s154
      %s158 = sphi 0, %s157
      %s174 = sphi 0, %s158
    $region4: #{tpu_custom_call.1} parent=1 // loop_header_branch
      %23 = sbr.rel (%p21) target = $region8
    $region5: #{tpu_custom_call.1} parent=1 // loop_body
      %s25 = ssub.s32 %s20, 1
      %s26 = ssub.s32 %s20, 2
      %s36 = sadd.s32 1, %s29
      %p37 = scmp.ge.s32.totalorder %s36, 2
      %s38 = scalar_select %p37, 0, %s36
      %s39 = sadd.s32 1, %s28
      %s40 = scalar_select %p37, %s39, %s28
      %p41 = scmp.ge.s32.totalorder %s40, 4
      %s42 = scalar_select %p41, 0, %s40
      %s43 = sadd.s32 1, %s27
      %s44 = scalar_select %p41, %s43, %s27
      %p45 = scmp.ge.s32.totalorder %s44, 1
      %s46 = scalar_select %p45, 0, %s44
      %s48 = sadd.s32 %s47, 1
      %p51 = scmp.eq.s32.totalorder %s20, 7
      %p52 = scmp.ne.s32.totalorder %s47, %s49
      %p53 = scmp.eq.s32.totalorder %s20, 0
      %p54 = por %p52, %p53
      %p55 = scmp.ne.s32.totalorder %s47, %s49
      %p56 = scmp.eq.s32.totalorder %s25, 7
      %p57 = por %p55, %p56
      %p58 = scmp.ne.s32.totalorder %s49, %s50
      %p59 = scmp.eq.s32.totalorder %s25, 0
      %p60 = por %p58, %p59
      %p61 = scmp.ne.s32.totalorder %s49, %s50
      %p62 = scmp.eq.s32.totalorder %s26, 7
      %p63 = por %p61, %p62
      %p65 = scmp.ne.s32.totalorder %s50, %s64
      %p66 = scmp.eq.s32.totalorder %s26, 0
      %p67 = por %p65, %p66
      %s68 = ssub.s32 %s27, %s46
      %s69 = ssub.s32 %s29, %s38
      %s70 = sor.u32 %s68, %s69
      %p71 = scmp.eq.s32.totalorder %s70, 0
      %s73 = sadd.s32 %s72, 1
      %s74 = scalar_select %p71, %s72, %s73
      %p77 = pneg %p71
      %p78 = scmp.eq.s32.totalorder %s20, 7
      %p79 = por %p77, %p78
      %p80 = scmp.ne.s32.totalorder %s72, %s75
      %p81 = scmp.eq.s32.totalorder %s20, 0
      %p82 = por %p80, %p81
      %p83 = scmp.ne.s32.totalorder %s72, %s75
      %p84 = scmp.eq.s32.totalorder %s25, 7
      %p85 = por %p83, %p84
      %p86 = scmp.ne.s32.totalorder %s75, %s76
      %p87 = scmp.eq.s32.totalorder %s25, 0
      %p88 = por %p86, %p87
      %p89 = scmp.ne.s32.totalorder %s75, %s76
      %p90 = scmp.eq.s32.totalorder %s26, 7
      %p91 = por %p89, %p90
      %p93 = scmp.ne.s32.totalorder %s76, %s92
      %p94 = scmp.eq.s32.totalorder %s26, 0
      %p95 = por %p93, %p94
      %s96 = ssub.s32 %s29, %s38
      %s97 = ssub.s32 %s28, %s42
      %s98 = sor.u32 %s96, %s97
      %p99 = scmp.eq.s32.totalorder %s98, 0
      %s101 = sadd.s32 %s100, 1
      %s102 = scalar_select %p99, %s100, %s101
      %p105 = pneg %p99
      %p106 = scmp.eq.s32.totalorder %s20, 7
      %p107 = por %p105, %p106
      %p108 = scmp.ne.s32.totalorder %s100, %s103
      %p109 = scmp.eq.s32.totalorder %s20, 0
      %p110 = por %p108, %p109
      %p111 = scmp.ne.s32.totalorder %s100, %s103
      %p112 = scmp.eq.s32.totalorder %s25, 7
      %p113 = por %p111, %p112
      %p114 = scmp.ne.s32.totalorder %s103, %s104
      %p115 = scmp.eq.s32.totalorder %s25, 0
      %p116 = por %p114, %p115
      %p117 = scmp.ne.s32.totalorder %s103, %s104
      %p118 = scmp.eq.s32.totalorder %s26, 7
      %p119 = por %p117, %p118
      %p121 = scmp.ne.s32.totalorder %s104, %s120
      %p122 = scmp.eq.s32.totalorder %s26, 0
      %p123 = por %p121, %p122
      %s124 = ssub.s32 %s28, %s42
      %p125 = scmp.eq.s32.totalorder %s124, 0
      %s127 = sadd.s32 %s126, 1
      %s128 = scalar_select %p125, %s126, %s127
      %p131 = pneg %p125
      %p132 = scmp.eq.s32.totalorder %s20, 7
      %p133 = por %p131, %p132
      %p134 = scmp.ne.s32.totalorder %s126, %s129
      %p135 = scmp.eq.s32.totalorder %s20, 0
      %p136 = por %p134, %p135
      %p137 = scmp.ne.s32.totalorder %s126, %s129
      %p138 = scmp.eq.s32.totalorder %s25, 7
      %p139 = por %p137, %p138
      %p140 = scmp.ne.s32.totalorder %s129, %s130
      %p141 = scmp.eq.s32.totalorder %s25, 0
      %p142 = por %p140, %p141
      %p143 = scmp.ne.s32.totalorder %s129, %s130
      %p144 = scmp.eq.s32.totalorder %s26, 7
      %p145 = por %p143, %p144
      %p147 = scmp.ne.s32.totalorder %s130, %s146
      %p148 = scmp.eq.s32.totalorder %s26, 0
      %p149 = por %p147, %p148
      %s150 = ssub.s32 %s27, %s46
      %s151 = ssub.s32 %s28, %s42
      %s152 = sor.u32 %s150, %s151
      %p153 = scmp.eq.s32.totalorder %s152, 0
      %s155 = sadd.s32 %s154, 1
      %s156 = scalar_select %p153, %s154, %s155
      %p159 = pneg %p153
      %p160 = scmp.eq.s32.totalorder %s20, 7
      %p161 = por %p159, %p160
      %p162 = scmp.ne.s32.totalorder %s154, %s157
      %p163 = scmp.eq.s32.totalorder %s20, 0
      %p164 = por %p162, %p163
      %p165 = scmp.ne.s32.totalorder %s154, %s157
      %p166 = scmp.eq.s32.totalorder %s25, 7
      %p167 = por %p165, %p166
      %p168 = scmp.ne.s32.totalorder %s157, %s158
      %p169 = scmp.eq.s32.totalorder %s25, 0
      %p170 = por %p168, %p169
      %p171 = scmp.ne.s32.totalorder %s157, %s158
      %p172 = scmp.eq.s32.totalorder %s26, 7
      %p173 = por %p171, %p172
      %p175 = scmp.ne.s32.totalorder %s158, %s174
      %p176 = scmp.eq.s32.totalorder %s26, 0
      %p177 = por %p175, %p176
      %p178 = scmp.le.s32.totalorder 1, %s20
      %p179 = scmp.lt.s32.totalorder %s20, 9
      %p180 = pnand %p178, %p179
      %p181 = pneg %p180
      // Predicated region
      $region9: #{tpu_custom_call.1} parent=5 // pred_check
        _
      $region10: #{tpu_custom_call.1} parent=5 // pred_check_branch
        %183 = sbr.rel (%p180) target = $region12
      $region11: #{tpu_custom_call.1} parent=5 // pred_region
        %s184 = ssub.s32 %s20, 1
        // Predicated region
        $region13: #{tpu_custom_call.1} parent=11 // pred_check
          %p185 = pneg %p60
        $region14: #{tpu_custom_call.1} parent=11 // pred_check_branch
          %187 = sbr.rel (%p185) target = $region16
        $region15: #{tpu_custom_call.1} parent=11 // pred_region
          _
        $region16: #{tpu_custom_call.1} parent=11 // pred_fallthru
          _
      $region12: #{tpu_custom_call.1} parent=5 // pred_fallthru
        _
      %p188 = scmp.lt.s32.totalorder %s20, 8
      // Predicated region
      $region17: #{tpu_custom_call.1} parent=5 // pred_check
        %p189 = pneg %p188
      $region18: #{tpu_custom_call.1} parent=5 // pred_check_branch
        %191 = sbr.rel (%p189) target = $region20
      $region19: #{tpu_custom_call.1} parent=5 // pred_region
        // Predicated region
        $region21: #{tpu_custom_call.1} parent=19 // pred_check
          %p192 = pneg %p82
        $region22: #{tpu_custom_call.1} parent=19 // pred_check_branch
          %194 = sbr.rel (%p192) target = $region24
        $region23: #{tpu_custom_call.1} parent=19 // pred_region
          %s195 = sand.u32 %s72, 1
          %s196 = scalar_lea.sflag [#allocation4], %s195
          %s197 = sand.u32 %s72, 1
          %s198 = smul.addr %s197, 8
          %s199 = scalar_lea.vmem [#allocation3], %s198
          %s201 = ssub.s32 128, 128
          %202 = vsyncadd %s196, %s201
          %s203 = smul.addr %s27, 2
          %s204 = sadd.s32 %s29, %s203
          %s205 = smul.addr %s204, 128
          %s206 = scalar_lea.hbm %s1, %s205
          %s208 = sshll.u32 %s199, 4
          %s209 = int_to_ptr.vmem [resolvable:$true] %s208
          %211 = dma.hbm_to_vmem [thread:$0]  %s206, 128, %s209, %s196
        $region24: #{tpu_custom_call.1} parent=19 // pred_fallthru
          _
        // Predicated region
        $region25: #{tpu_custom_call.1} parent=19 // pred_check
          %p212 = pneg %p110
        $region26: #{tpu_custom_call.1} parent=19 // pred_check_branch
          %214 = sbr.rel (%p212) target = $region28
        $region27: #{tpu_custom_call.1} parent=19 // pred_region
          %s215 = sand.u32 %s100, 1
          %s216 = scalar_lea.sflag [#allocation7], %s215
          %s217 = sand.u32 %s100, 1
          %s218 = smul.addr %s217, 128
          %s219 = scalar_lea.vmem [#allocation6], %s218
          %s220 = smul.u32 16, %s29
          %s222 = ssub.s32 2048, 2048
          %223 = vsyncadd %s216, %s222
          %s224 = smul.addr %s220, 4
          %s225 = sadd.s32 %s28, %s224
          %s226 = smul.addr %s225, 128
          %s227 = scalar_lea.hbm %s2, %s226
          %s228 = sshll.u32 %s219, 4
          %s229 = int_to_ptr.vmem [resolvable:$true] %s228
          %234 = dma.hbm_to_vmem [thread:$0]  %s227, 2048, %s229, %s216, 512, 128, 8
        $region28: #{tpu_custom_call.1} parent=19 // pred_fallthru
          _
        // Predicated region
        $region29: #{tpu_custom_call.1} parent=19 // pred_check
          %p235 = pneg %p136
        $region30: #{tpu_custom_call.1} parent=19 // pred_check_branch
          %237 = sbr.rel (%p235) target = $region32
        $region31: #{tpu_custom_call.1} parent=19 // pred_region
          %p238 = scmp.lt.s32.totalorder %s28, 3
          %s239 = scalar_select %p238, %s28, 3
          %s240 = scalar_lea.vmem %s3, %s239
        $region32: #{tpu_custom_call.1} parent=19 // pred_fallthru
          _
      $region20: #{tpu_custom_call.1} parent=5 // pred_fallthru
        _
      %p241 = scmp.le.s32.totalorder 1, %s20
      %p242 = scmp.lt.s32.totalorder %s20, 9
      %p243 = pnand %p241, %p242
      %p244 = pneg %p243
      // Predicated region
      $region33: #{tpu_custom_call.1} parent=5 // pred_check
        _
      $region34: #{tpu_custom_call.1} parent=5 // pred_check_branch
        %246 = sbr.rel (%p243) target = $region36
      $region35: #{tpu_custom_call.1} parent=5 // pred_region
        %s247 = ssub.s32 %s20, 1
        %s248 = sand.u32 %s75, 1
        %s249 = scalar_lea.sflag [#allocation4], %s248
        %s250 = sand.u32 %s75, 1
        %s251 = smul.addr %s250, 8
        %s252 = scalar_lea.vmem [#allocation3], %s251
        // Predicated region
        $region37: #{tpu_custom_call.1} parent=35 // pred_check
          %p253 = pneg %p88
        $region38: #{tpu_custom_call.1} parent=35 // pred_check_branch
          %255 = sbr.rel (%p253) target = $region40
        $region39: #{tpu_custom_call.1} parent=35 // pred_region
          %256 = dma.done %s249, 128
        $region40: #{tpu_custom_call.1} parent=35 // pred_fallthru
          _
        %s257 = sand.u32 %s103, 1
        %s258 = scalar_lea.sflag [#allocation7], %s257
        %s259 = sand.u32 %s103, 1
        %s260 = smul.addr %s259, 128
        %s261 = scalar_lea.vmem [#allocation6], %s260
        // Predicated region
        $region41: #{tpu_custom_call.1} parent=35 // pred_check
          %p262 = pneg %p116
        $region42: #{tpu_custom_call.1} parent=35 // pred_check_branch
          %264 = sbr.rel (%p262) target = $region44
        $region43: #{tpu_custom_call.1} parent=35 // pred_region
          %265 = dma.done %s258, 2048
        $region44: #{tpu_custom_call.1} parent=35 // pred_fallthru
          _
        %p266 = pneg %p60
        %p267 = pneg %p57
        %s268 = sand.u32 %s75, 1
        %s269 = scalar_lea.sflag [#allocation4], %s268
        %s270 = sand.u32 %s75, 1
        %s271 = smul.addr %s270, 8
        %s272 = scalar_lea.vmem [#allocation3], %s271
        %p273 = pneg %p88
        %p274 = pneg %p85
        %s275 = sand.u32 %s103, 1
        %s276 = scalar_lea.sflag [#allocation7], %s275
        %s277 = sand.u32 %s103, 1
        %s278 = smul.addr %s277, 128
        %s279 = scalar_lea.vmem [#allocation6], %s278
        %p280 = pneg %p116
        %p281 = pneg %p113
        %p282 = scmp.lt.s32.totalorder %s31, 3
        %s283 = scalar_select %p282, %s31, 3
        %s284 = scalar_lea.vmem %s3, %s283
        %p285 = pneg %p142
        %p286 = pneg %p139
        %p287 = pneg %p170
        %p288 = pneg %p167
        %s289 = sand.u32 %s157, 1
        %s290 = scalar_lea.sflag [#allocation5], %s289
        %s291 = sand.u32 %s157, 1
        %s292 = smul.addr %s291, 8
        %s293 = scalar_lea.vmem [#allocation8], %s292
        %s294 = smul.u32 16, %s32
        %p295 = scmp.lt.s32.totalorder %s31, 3
        %s296 = scalar_select %p295, %s31, 3
        %s297 = scalar_lea.vmem %s3, %s296
        %p298 = scmp.eq.s32.totalorder %s32, 0
        // Predicated region
        $region45: #{tpu_custom_call.1} parent=35 // pred_check
          %p299 = pneg %p298
        $region46: #{tpu_custom_call.1} parent=35 // pred_check_branch
          %301 = sbr.rel (%p299) target = $region48
        $region47: #{tpu_custom_call.1} parent=35 // pred_region
          %302 = vst [vmem:[%s293] sm:$0xff] 0.0
        $region48: #{tpu_custom_call.1} parent=35 // pred_fallthru
          _
        %v303 = vld [vmem:[%s293] sm:$0xff]
        %v304 = vld [vmem:[%s252] sm:$0xff]
        %v305 = vld [vmem:[%s261] sm:$0xff]
        %v306 = vld [vmem:[%s261 + $0x8] sm:$0xff]
        %v307 = vld [vmem:[%s261 + $0x10] sm:$0xff]
        %v308 = vld [vmem:[%s261 + $0x18] sm:$0xff]
        %v309 = vld [vmem:[%s261 + $0x20] sm:$0xff]
        %v310 = vld [vmem:[%s261 + $0x28] sm:$0xff]
        %v311 = vld [vmem:[%s261 + $0x30] sm:$0xff]
        %v312 = vld [vmem:[%s261 + $0x38] sm:$0xff]
        %v313 = vld [vmem:[%s261 + $0x40] sm:$0xff]
        %v314 = vld [vmem:[%s261 + $0x48] sm:$0xff]
        %v315 = vld [vmem:[%s261 + $0x50] sm:$0xff]
        %v316 = vld [vmem:[%s261 + $0x58] sm:$0xff]
        %v317 = vld [vmem:[%s261 + $0x60] sm:$0xff]
        %v318 = vld [vmem:[%s261 + $0x68] sm:$0xff]
        %v319 = vld [vmem:[%s261 + $0x70] sm:$0xff]
        %v320 = vld [vmem:[%s261 + $0x78] sm:$0xff]
        %321 = vmatprep.subr.mxu0 0.0
        %322 = vmatpush1.msra.mxu0 %v305
        %323 = vmatprep.subr.mxu0 0.0
        %324 = vmatpush1.msra.mxu0 %v306
        %325 = vmatprep.subr.mxu0 0.0
        %326 = vmatpush1.msra.mxu0 %v307
        %327 = vmatprep.subr.mxu0 0.0
        %328 = vmatpush1.msra.mxu0 %v308
        %329 = vmatprep.subr.mxu0 0.0
        %330 = vmatpush1.msra.mxu0 %v309
        %331 = vmatprep.subr.mxu0 0.0
        %332 = vmatpush1.msra.mxu0 %v310
        %333 = vmatprep.subr.mxu0 0.0
        %334 = vmatpush1.msra.mxu0 %v311
        %335 = vmatprep.subr.mxu0 0.0
        %336 = vmatpush1.msra.mxu0 %v312
        %337 = vmatprep.subr.mxu0 0.0
        %338 = vmatpush1.msra.mxu0 %v313
        %339 = vmatprep.subr.mxu0 0.0
        %340 = vmatpush1.msra.mxu0 %v314
        %341 = vmatprep.subr.mxu0 0.0
        %342 = vmatpush1.msra.mxu0 %v315
        %343 = vmatprep.subr.mxu0 0.0
        %344 = vmatpush1.msra.mxu0 %v316
        %345 = vmatprep.subr.mxu0 0.0
        %346 = vmatpush1.msra.mxu0 %v317
        %347 = vmatprep.subr.mxu0 0.0
        %348 = vmatpush1.msra.mxu0 %v318
        %349 = vmatprep.subr.mxu0 0.0
        %350 = vmatpush1.msra.mxu0 %v319
        %351 = vmatprep.subr.mxu0 0.0
        %352 = vmatpush1.msra.mxu0 %v320
        %353 = vmatprep.subr.mxu0 0.0
        %354 = vmatpush1.msra.mxu0 0.0
        %355 = vmatprep.subr.mxu0 0.0
        %356 = vmatpush1.msra.mxu0 0.0
        %357 = vmatprep.subr.mxu0 0.0
        %358 = vmatpush1.msra.mxu0 0.0
        %359 = vmatprep.subr.mxu0 0.0
        %360 = vmatpush1.msra.mxu0 0.0
        %361 = vmatprep.subr.mxu0 0.0
        %362 = vmatpush1.msra.mxu0 0.0
        %363 = vmatprep.subr.mxu0 0.0
        %364 = vmatpush1.msra.mxu0 0.0
        %365 = vmatprep.subr.mxu0 0.0
        %366 = vmatpush1.msra.mxu0 0.0
        %367 = vmatprep.subr.mxu0 0.0
        %368 = vmatpush1.msra.mxu0 0.0
        %369 = vmatprep.subr.mxu0 0.0
        %370 = vmatpush1.msra.mxu0 0.0
        %371 = vmatprep.subr.mxu0 0.0
        %372 = vmatpush1.msra.mxu0 0.0
        %373 = vmatprep.subr.mxu0 0.0
        %374 = vmatpush1.msra.mxu0 0.0
        %375 = vmatprep.subr.mxu0 0.0
        %376 = vmatpush1.msra.mxu0 0.0
        %377 = vmatprep.subr.mxu0 0.0
        %378 = vmatpush1.msra.mxu0 0.0
        %379 = vmatprep.subr.mxu0 0.0
        %380 = vmatpush1.msra.mxu0 0.0
        %381 = vmatprep.subr.mxu0 0.0
        %382 = vmatpush1.msra.mxu0 0.0
        %383 = vmatprep.subr.mxu0 0.0
        %384 = vmatpush1.msra.mxu0 0.0
        %385 = vmatprep.mubr.f32.mxu0 0.0
        %386 = vmatmul.mubr.f32.gmra.mrb[0].mxu0 %v304
        %v387 = vpop.f32.mrb[0].mxu0
        %v388 = vadd.f32 0.0, %v387
        %v389 = vpop.f32.mrb[0].mxu0
        %390 = vdwg.mxu0
        %v391 = vadd.f32 %v303, %v388
        %392 = vst [vmem:[%s293] sm:$0xff] %v391
        %p393 = scmp.eq.s32.totalorder %s32, 1
        // Predicated region
        $region49: #{tpu_custom_call.1} parent=35 // pred_check
          %p394 = pneg %p393
        $region50: #{tpu_custom_call.1} parent=35 // pred_check_branch
          %396 = sbr.rel (%p394) target = $region52
        $region51: #{tpu_custom_call.1} parent=35 // pred_region
          %s397 = sld [smem:[#allocation2]]
          %v398 = vstv %s397
          %v399 = vrcp.pop %v398
          %s400 = vtos %v399
          %v401 = vld [vmem:[%s293] sm:$0xff]
          %v402 = vld [vmem:[%s297] sm:$0x1]
          %v404 = vlaneseq
          %v405 = vshrl.u32 %v404, 7
          %v406 = vsub.s32 0, %v405
          %v407 = vrot.slane %v402, %v406
          %v409 = vadd.f32 %v401, %v407
          %v410 = vstv %s400
          %v411 = vmul.f32 %v409, %v410
          %412 = vst [vmem:[%s293] sm:$0xff] %v411
        $region52: #{tpu_custom_call.1} parent=35 // pred_fallthru
          _
        %s413 = sand.u32 %s157, 1
        %s414 = scalar_lea.sflag [#allocation5], %s413
        %s415 = sand.u32 %s157, 1
        %s416 = smul.addr %s415, 8
        %s417 = scalar_lea.vmem [#allocation8], %s416
        // Predicated region
        $region53: #{tpu_custom_call.1} parent=35 // pred_check
          %p418 = pneg %p167
        $region54: #{tpu_custom_call.1} parent=35 // pred_check_branch
          %420 = sbr.rel (%p418) target = $region56
        $region55: #{tpu_custom_call.1} parent=35 // pred_region
          %s422 = ssub.s32 128, 128
          %423 = vsyncadd %s414, %s422
          %s424 = smul.addr %s30, 4
          %s425 = sadd.s32 %s31, %s424
          %s426 = smul.addr %s425, 128
          %s427 = scalar_lea.hbm %s4, %s426
          %s429 = sshll.u32 %s417, 4
          %s430 = int_to_ptr.vmem [resolvable:$true] %s429
          %432 = dma.vmem_to_hbm [thread:$0]  %s430, 128, %s427, %s414
        $region56: #{tpu_custom_call.1} parent=35 // pred_fallthru
          _
      $region36: #{tpu_custom_call.1} parent=5 // pred_fallthru
        _
      %p433 = scmp.le.s32.totalorder 2, %s20
      // Predicated region
      $region57: #{tpu_custom_call.1} parent=5 // pred_check
        %p434 = pneg %p433
      $region58: #{tpu_custom_call.1} parent=5 // pred_check_branch
        %436 = sbr.rel (%p434) target = $region60
      $region59: #{tpu_custom_call.1} parent=5 // pred_region
        %s437 = ssub.s32 %s20, 2
        // Predicated region
        $region61: #{tpu_custom_call.1} parent=59 // pred_check
          %p438 = pneg %p173
        $region62: #{tpu_custom_call.1} parent=59 // pred_check_branch
          %440 = sbr.rel (%p438) target = $region64
        $region63: #{tpu_custom_call.1} parent=59 // pred_region
          %s441 = sand.u32 %s158, 1
          %s442 = scalar_lea.sflag [#allocation5], %s441
          %s443 = sand.u32 %s158, 1
          %s444 = smul.addr %s443, 8
          %s445 = scalar_lea.vmem [#allocation8], %s444
          %446 = dma.done %s442, 128
        $region64: #{tpu_custom_call.1} parent=59 // pred_fallthru
          _
      $region60: #{tpu_custom_call.1} parent=5 // pred_fallthru
        _
    $region6: #{tpu_custom_call.1} parent=1 // loop_footer
      %s24 = sadd.s32 1, %s20
    $region7: #{tpu_custom_call.1} parent=1 // loop_footer_branch
      %19 = sbr.rel target = $region3
    $region8: #{tpu_custom_call.1} parent=1 // loop_exit
      _
    %447 = vsyncpa [#allocation4], 1
    %s448 = scalar_lea.sflag [#allocation4], 1
    %449 = vsyncpa %s448, 1
    %450 = vsyncpa [#allocation7], 1
    %s451 = scalar_lea.sflag [#allocation7], 1
    %452 = vsyncpa %s451, 1
    %453 = vsyncpa [#allocation5], 1
    %s454 = scalar_lea.sflag [#allocation5], 1
    %455 = vsyncpa %s454, 1

</llo_original>
